<compile_context>
chip_gen: v6e
topology: v6e:2x2x1
jax: 0.10.0
libtpu: 0.0.40
codegen_flags: <defaults>
</compile_context>

<pallas_src>
import functools

import jax
import jax.numpy as jnp
from jax.experimental import pallas as pl
from jax.experimental.pallas import tpu as pltpu


def _attention_kernel(x_ref, mask_ref, w_ref, o_ref, m_sc, l_sc, acc_sc, *,
                      approx_recip):
    s_idx = pl.program_id(1)

    @pl.when(s_idx == 0)
    def _init():
        m_sc[...] = jnp.full(m_sc.shape, -jnp.inf, dtype=m_sc.dtype)
        l_sc[...] = jnp.zeros(l_sc.shape, dtype=l_sc.dtype)
        acc_sc[...] = jnp.zeros(acc_sc.shape, dtype=acc_sc.dtype)

    x = x_ref[...]                                  # (Bt, Sb, H), native dtype
    mask = mask_ref[...].astype(jnp.float32)        # (Bt, Sb)
    bt, sb, h = x.shape

    # Projection on the MXU with hardware f32 accumulation (no (Bt,Sb,H) f32
    # temporary): batched (Sb,H) x (H,1) mat-vec, same batched dot_general
    # pattern as flash-attention's 'bqd,bkd->bqk'.
    w3 = jnp.broadcast_to(w_ref[...].astype(x.dtype).reshape(1, 1, h),
                          (bt, 1, h))
    logits = jnp.einsum("bsh,boh->bso", x, w3,
                        preferred_element_type=jnp.float32)[..., 0]  # (Bt, Sb)

    # Streaming masked softmax over the sequence axis (running max / denom).
    # The running per-row max replaces torch's global max; the shift cancels
    # in the normalization so the result is identical.
    m_prev = m_sc[...]                                              # (Bt, 1)
    m_new = jnp.maximum(m_prev, jnp.max(logits, axis=-1, keepdims=True))
    alpha = jnp.exp(m_prev - m_new)                                 # (Bt, 1)
    p = jnp.exp(logits - m_new) * mask                              # (Bt, Sb)

    l_sc[...] = alpha * l_sc[...] + jnp.sum(p, axis=-1, keepdims=True)

    # Weighted pooled sum on the MXU (f32 accumulation):
    # (Bt,1,Sb) x (Bt,Sb,H) -> (Bt,1,H), same pattern as flash's 'bqk,bkd->bqd'.
    acc_sc[...] = alpha * acc_sc[...] + jnp.einsum(
        "bos,bsh->boh", p.astype(x.dtype)[:, None, :], x,
        preferred_element_type=jnp.float32)[:, 0, :]
    m_sc[...] = m_new

    @pl.when(s_idx == pl.num_programs(1) - 1)
    def _finalize():
        inv = pl.reciprocal(l_sc[...], approx=approx_recip)          # (Bt, 1)
        o_ref[...] = (acc_sc[...] * inv).astype(o_ref.dtype)         # (Bt, H)


def attention_forward(x, mask, w, *, block_b=None, block_s=None,
                      vmem_limit_bytes=None):
    B, S, H = x.shape
    assert mask.shape == (B, S)
    assert w.shape == (1, H)

    itemsize = jnp.dtype(x.dtype).itemsize

    # ---- scoped-VMEM limit, re-derived per chip (128 MiB v5e/v6e, 64 MiB/TC
    #      v7x): min(96 MiB, 3/4 of physical) -> 96 MiB / 96 MiB / 48 MiB.
    if vmem_limit_bytes is None:
        phys = 128 * 1024 * 1024
        try:
            phys = int(getattr(pltpu.get_tpu_info(), "vmem_capacity_bytes",
                               phys))
        except Exception:
            pass
        vmem_limit_bytes = int(min(96 * 1024 * 1024, (phys * 3) // 4))
    # Per-buffer budget for one x tile (2 double-buffered x tiles + mask/out
    # buffers + f32 scratch must all fit under the limit).
    budget = max(64 * 1024, vmem_limit_bytes // 5)

    # ---- sequence tile: full S unless even an 8-row batch tile would blow the
    #      budget; then pick the largest lane-legal (multiple of 128) divisor.
    if block_s is None:
        block_s = S
        min_rows = min(B, 8)
        if min_rows * S * H * itemsize > budget and S % 128 == 0:
            best = 128
            cand = 128
            while cand < S:
                if S % cand == 0 and min_rows * cand * H * itemsize <= budget:
                    best = cand
                cand += 128
            block_s = best
    assert S % block_s == 0, "block_s must divide S"
    num_s = S // block_s

    # ---- batch tile: multiple of 8 (sublane-legal) or the whole batch.
    #      Ragged tails are handled by cdiv, never by shrinking to odd sizes.
    if block_b is None:
        rows_fit = max(1, budget // max(1, block_s * H * itemsize))
        if B <= 8:
            block_b = B
        else:
            block_b = min(B, max(8, (rows_fit // 8) * 8))
            if num_s == 1:
                # Keep >=2 pipelined steps (>=4 for larger B; helps v7x's two
                # TensorCores) when the whole problem would fit in one block.
                if B >= 32:
                    block_b = min(block_b, max(8, ((B // 4) // 8) * 8))
                elif B >= 16:
                    block_b = min(block_b, max(8, ((B // 2) // 8) * 8))
    block_b = max(1, min(block_b, B))
    if block_b != B and block_b % 8 != 0:
        block_b = max(8, (block_b // 8) * 8) if block_b > 8 else min(8, B)

    grid = (pl.cdiv(B, block_b), num_s)
    approx_recip = jnp.dtype(x.dtype) != jnp.dtype(jnp.float32)

    flops = 4 * B * S * H                       # projection + pooled sum
    bytes_accessed = (x.size * x.dtype.itemsize
                      + mask.size * mask.dtype.itemsize
                      + w.size * w.dtype.itemsize
                      + B * H * x.dtype.itemsize)

    return pl.pallas_call(
        functools.partial(_attention_kernel, approx_recip=approx_recip),
        out_shape=jax.ShapeDtypeStruct((B, H), x.dtype),
        grid=grid,
        in_specs=[
            pl.BlockSpec((block_b, block_s, H), lambda b, s: (b, s, 0)),  # x
            pl.BlockSpec((block_b, block_s), lambda b, s: (b, s)),        # mask
            pl.BlockSpec((1, H), lambda b, s: (0, 0)),                    # w
        ],
        out_specs=pl.BlockSpec((block_b, H), lambda b, s: (b, 0)),
        scratch_shapes=[
            pltpu.VMEM((block_b, 1), jnp.float32),   # running max
            pltpu.VMEM((block_b, 1), jnp.float32),   # running denominator
            pltpu.VMEM((block_b, H), jnp.float32),   # unnormalized accumulator
        ],
        compiler_params=pltpu.CompilerParams(
            dimension_semantics=("parallel", "arbitrary"),
            vmem_limit_bytes=vmem_limit_bytes),
        cost_estimate=pl.CostEstimate(
            flops=flops, transcendentals=B * S, bytes_accessed=bytes_accessed),
    )(x, mask, w)


def attention_reference(x, mask, w):
    # Pure-JAX reference mirroring the PyTorch forward exactly (global max).
    logits = jnp.einsum("bsh,oh->bso", x, w)                    # (B, S, 1)
    logits = jnp.exp(logits - jnp.max(logits)) * mask[:, :, None]
    denom = jnp.sum(logits, axis=1, keepdims=True)
    attn = logits / denom
    return jnp.sum(x * attn, axis=1)


if __name__ == "__main__":
    key = jax.random.PRNGKey(0)

    # --- small case at the module's natural shapes ---------------------------
    B, S, H = 2, 8, 32
    kx, kw, key = jax.random.split(key, 3)
    x = jax.random.normal(kx, (B, S, H), dtype=jnp.float32)
    lengths = jnp.array([[6], [8]], dtype=jnp.int32)            # (B, 1)
    mask = (jnp.arange(S)[None, :] < lengths).astype(jnp.float32)
    # nn.Linear(H, 1, bias=False).weight has shape (1, H), init U(-0.01, 0.01).
    w = jax.random.uniform(kw, (1, H), minval=-0.01, maxval=0.01,
                           dtype=jnp.float32)

    out = jax.block_until_ready(attention_forward(x, mask, w))
    ref = attention_reference(x, mask, w)
    assert out.shape == (B, H)
    assert jnp.allclose(out, ref, atol=1e-5, rtol=1e-5), (
        f"max abs err = {jnp.max(jnp.abs(out - ref))}")

    # --- larger case exercising batch tiling, the streaming-softmax sequence
    #     axis, and a ragged batch tail ---------------------------------------
    B2, S2, H2 = 20, 256, 128
    kx2, kw2, km2 = jax.random.split(key, 3)
    x2 = jax.random.normal(kx2, (B2, S2, H2), dtype=jnp.float32)
    lengths2 = jax.random.randint(km2, (B2, 1), 1, S2 + 1)
    mask2 = (jnp.arange(S2)[None, :] < lengths2).astype(jnp.float32)
    w2 = jax.random.uniform(kw2, (1, H2), minval=-0.01, maxval=0.01,
                            dtype=jnp.float32)

    out2 = jax.block_until_ready(
        attention_forward(x2, mask2, w2, block_b=8, block_s=128))
    ref2 = attention_reference(x2, mask2, w2)
    assert out2.shape == (B2, H2)
    assert jnp.allclose(out2, ref2, atol=1e-4, rtol=1e-4), (
        f"max abs err = {jnp.max(jnp.abs(out2 - ref2))}")

    print("KERNEL_OK")
</pallas_src>

<mosaic_0001>
module attributes {stable_mosaic.version = 11 : i64} {
  func.func @_attention_kernel(%arg0: i32, %arg1: i32, %arg2: memref<2x8x32xf32, #tpu.memory_space<vmem>>, %arg3: memref<2x8xf32, #tpu.memory_space<vmem>>, %arg4: memref<1x32xf32, #tpu.memory_space<vmem>>, %arg5: memref<2x32xf32, #tpu.memory_space<vmem>>, %arg6: memref<2x1xf32, #tpu.memory_space<vmem>>, %arg7: memref<2x1xf32, #tpu.memory_space<vmem>>, %arg8: memref<2x32xf32, #tpu.memory_space<vmem>>) attributes {dimension_semantics = [#tpu.dimension_semantics<parallel>, #tpu.dimension_semantics<arbitrary>], iteration_bounds = array<i64: 1, 1>, scalar_prefetch = 0 : i64, scratch_operands = 3 : i64, tpu.core_type = #tpu.core_type<tc>, window_params = [{transform_indices = @transform_0, window_bounds = array<i64: 2, 8, 32>}, {transform_indices = @transform_1, window_bounds = array<i64: 2, 8>}, {pipeline_mode = #tpu.pipeline_mode<synchronous>, transform_indices = @transform_2, window_bounds = array<i64: 1, 32>}, {transform_indices = @transform_3, window_bounds = array<i64: 2, 32>}]} {
    %c0_i32 = arith.constant 0 : i32
    %0 = arith.cmpi eq, %arg1, %c0_i32 : i32
    %1 = arith.extui %0 : i1 to i32
    %c0_i32_0 = arith.constant 0 : i32
    %2 = arith.cmpi ne, %1, %c0_i32_0 : i32
    scf.if %2 {
      %cst_24 = arith.constant 0xFF800000 : f32
      %39 = vector.broadcast %cst_24 : f32 to vector<2x1xf32>
      %c0_25 = arith.constant 0 : index
      %c0_26 = arith.constant 0 : index
      %40 = vector.load %arg6[%c0_25, %c0_26] : memref<2x1xf32, #tpu.memory_space<vmem>>, vector<2x1xf32>
      tpu.vector_store %arg6[%c0_25, %c0_26], %39 {strides = array<i32>} : memref<2x1xf32, #tpu.memory_space<vmem>>, vector<2x1xf32>,
      %cst_27 = arith.constant 0.000000e+00 : f32
      %41 = vector.broadcast %cst_27 : f32 to vector<2x1xf32>
      %c0_28 = arith.constant 0 : index
      %c0_29 = arith.constant 0 : index
      %42 = vector.load %arg7[%c0_28, %c0_29] : memref<2x1xf32, #tpu.memory_space<vmem>>, vector<2x1xf32>
      tpu.vector_store %arg7[%c0_28, %c0_29], %41 {strides = array<i32>} : memref<2x1xf32, #tpu.memory_space<vmem>>, vector<2x1xf32>,
      %cst_30 = arith.constant 0.000000e+00 : f32
      %43 = vector.broadcast %cst_30 : f32 to vector<2x32xf32>
      %c0_31 = arith.constant 0 : index
      %c0_32 = arith.constant 0 : index
      %44 = vector.load %arg8[%c0_31, %c0_32] : memref<2x32xf32, #tpu.memory_space<vmem>>, vector<2x32xf32>
      tpu.vector_store %arg8[%c0_31, %c0_32], %43 {strides = array<i32>} : memref<2x32xf32, #tpu.memory_space<vmem>>, vector<2x32xf32>,
    } else {
    }
    %c0 = arith.constant 0 : index
    %c0_1 = arith.constant 0 : index
    %c0_2 = arith.constant 0 : index
    %3 = vector.load %arg2[%c0, %c0_1, %c0_2] : memref<2x8x32xf32, #tpu.memory_space<vmem>>, vector<2x8x32xf32>
    %c0_3 = arith.constant 0 : index
    %c0_4 = arith.constant 0 : index
    %4 = vector.load %arg3[%c0_3, %c0_4] : memref<2x8xf32, #tpu.memory_space<vmem>>, vector<2x8xf32>
    %c0_5 = arith.constant 0 : index
    %c0_6 = arith.constant 0 : index
    %5 = vector.load %arg4[%c0_5, %c0_6] : memref<1x32xf32, #tpu.memory_space<vmem>>, vector<1x32xf32>
    %6 = vector.shape_cast %5 : vector<1x32xf32> to vector<1x1x32xf32>
    %7 = vector.shape_cast %6 : vector<1x1x32xf32> to vector<1x1x32xf32>
    %8 = vector.broadcast %7 : vector<1x1x32xf32> to vector<2x1x32xf32>
    "tpu.trace_start"() <{level = 10 : i32, message = "bsh,boh->bso"}> : () -> ()
    %cst = arith.constant dense<0.000000e+00> : vector<2x8x1xf32>
    %9 = tpu.matmul %3, %8, %cst {dimension_numbers = #tpu.dot_dimension_numbers<[2], [2], [1], [1], [0, 0, 0, 1, 1, 1], [0], [0]>} : vector<2x8x32xf32>, vector<2x1x32xf32>, vector<2x8x1xf32> -> vector<2x8x1xf32>
    "tpu.trace_stop"() : () -> ()
    %10 = vector.shape_cast %9 : vector<2x8x1xf32> to vector<2x8xf32>
    %c0_7 = arith.constant 0 : index
    %c0_8 = arith.constant 0 : index
    %11 = vector.load %arg6[%c0_7, %c0_8] : memref<2x1xf32, #tpu.memory_space<vmem>>, vector<2x1xf32>
    %cst_9 = arith.constant dense<0xFF800000> : vector<2xf32>
    %12 = vector.multi_reduction <maximumf>, %10, %cst_9 [1] : vector<2x8xf32> to vector<2xf32>
    %13 = vector.shape_cast %12 : vector<2xf32> to vector<2x1xf32>
    %14 = arith.maximumf %11, %13 : vector<2x1xf32>
    %15 = arith.subf %11, %14 : vector<2x1xf32>
    %16 = math.exp %15 : vector<2x1xf32>
    %17 = vector.broadcast %14 : vector<2x1xf32> to vector<2x8xf32>
    %18 = arith.subf %10, %17 : vector<2x8xf32>
    %19 = math.exp %18 : vector<2x8xf32>
    %20 = arith.mulf %19, %4 : vector<2x8xf32>
    %c0_10 = arith.constant 0 : index
    %c0_11 = arith.constant 0 : index
    %21 = vector.load %arg7[%c0_10, %c0_11] : memref<2x1xf32, #tpu.memory_space<vmem>>, vector<2x1xf32>
    %22 = arith.mulf %16, %21 : vector<2x1xf32>
    %cst_12 = arith.constant dense<0.000000e+00> : vector<2xf32>
    %23 = vector.multi_reduction <add>, %20, %cst_12 [1] : vector<2x8xf32> to vector<2xf32>
    %24 = vector.shape_cast %23 : vector<2xf32> to vector<2x1xf32>
    %25 = arith.addf %22, %24 : vector<2x1xf32>
    %c0_13 = arith.constant 0 : index
    %c0_14 = arith.constant 0 : index
    %26 = vector.load %arg7[%c0_13, %c0_14] : memref<2x1xf32, #tpu.memory_space<vmem>>, vector<2x1xf32>
    tpu.vector_store %arg7[%c0_13, %c0_14], %25 {strides = array<i32>} : memref<2x1xf32, #tpu.memory_space<vmem>>, vector<2x1xf32>,
    %c0_15 = arith.constant 0 : index
    %c0_16 = arith.constant 0 : index
    %27 = vector.load %arg8[%c0_15, %c0_16] : memref<2x32xf32, #tpu.memory_space<vmem>>, vector<2x32xf32>
    %28 = vector.broadcast %16 : vector<2x1xf32> to vector<2x32xf32>
    %29 = arith.mulf %28, %27 : vector<2x32xf32>
    %30 = vector.shape_cast %20 : vector<2x8xf32> to vector<2x1x8xf32>
    "tpu.trace_start"() <{level = 10 : i32, message = "bos,bsh->boh"}> : () -> ()
    %cst_17 = arith.constant dense<0.000000e+00> : vector<2x1x32xf32>
    %31 = tpu.matmul %30, %3, %cst_17 {dimension_numbers = #tpu.dot_dimension_numbers<[2], [1], [1], [2], [0, 0, 0, 1, 1, 2], [0], [0]>} : vector<2x1x8xf32>, vector<2x8x32xf32>, vector<2x1x32xf32> -> vector<2x1x32xf32>
    "tpu.trace_stop"() : () -> ()
    %32 = vector.shape_cast %31 : vector<2x1x32xf32> to vector<2x32xf32>
    %33 = arith.addf %29, %32 : vector<2x32xf32>
    %c0_18 = arith.constant 0 : index
    %c0_19 = arith.constant 0 : index
    %34 = vector.load %arg8[%c0_18, %c0_19] : memref<2x32xf32, #tpu.memory_space<vmem>>, vector<2x32xf32>
    tpu.vector_store %arg8[%c0_18, %c0_19], %33 {strides = array<i32>} : memref<2x32xf32, #tpu.memory_space<vmem>>, vector<2x32xf32>,
    %c0_20 = arith.constant 0 : index
    %c0_21 = arith.constant 0 : index
    %35 = vector.load %arg6[%c0_20, %c0_21] : memref<2x1xf32, #tpu.memory_space<vmem>>, vector<2x1xf32>
    tpu.vector_store %arg6[%c0_20, %c0_21], %14 {strides = array<i32>} : memref<2x1xf32, #tpu.memory_space<vmem>>, vector<2x1xf32>,
    %c0_i32_22 = arith.constant 0 : i32
    %36 = arith.cmpi eq, %arg1, %c0_i32_22 : i32
    %37 = arith.extui %36 : i1 to i32
    %c0_i32_23 = arith.constant 0 : i32
    %38 = arith.cmpi ne, %37, %c0_i32_23 : i32
    scf.if %38 {
      %c0_24 = arith.constant 0 : index
      %c0_25 = arith.constant 0 : index
      %39 = vector.load %arg7[%c0_24, %c0_25] : memref<2x1xf32, #tpu.memory_space<vmem>>, vector<2x1xf32>
      %40 = tpu.reciprocal %39 : vector<2x1xf32> -> vector<2x1xf32>
      %c0_26 = arith.constant 0 : index
      %c0_27 = arith.constant 0 : index
      %41 = vector.load %arg8[%c0_26, %c0_27] : memref<2x32xf32, #tpu.memory_space<vmem>>, vector<2x32xf32>
      %42 = vector.broadcast %40 : vector<2x1xf32> to vector<2x32xf32>
      %43 = arith.mulf %41, %42 : vector<2x32xf32>
      %c0_28 = arith.constant 0 : index
      %c0_29 = arith.constant 0 : index
      %44 = vector.load %arg5[%c0_28, %c0_29] : memref<2x32xf32, #tpu.memory_space<vmem>>, vector<2x32xf32>
      tpu.vector_store %arg5[%c0_28, %c0_29], %43 {strides = array<i32>} : memref<2x32xf32, #tpu.memory_space<vmem>>, vector<2x32xf32>,
    } else {
    }
    return
  }
  func.func @transform_0(%arg0: i32, %arg1: i32) -> (i32, i32, i32) {
    %c0_i32 = arith.constant 0 : i32
    %c0_i32_0 = arith.constant 0 : i32
    return %arg0, %arg1, %c0_i32 : i32, i32, i32
  }
  func.func @transform_1(%arg0: i32, %arg1: i32) -> (i32, i32) {
    %c0_i32 = arith.constant 0 : i32
    return %arg0, %arg1 : i32, i32
  }
  func.func @transform_2(%arg0: i32, %arg1: i32) -> (i32, i32) {
    %c0_i32 = arith.constant 0 : i32
    %c0_i32_0 = arith.constant 0 : i32
    %c0_i32_1 = arith.constant 0 : i32
    return %c0_i32, %c0_i32_0 : i32, i32
  }
  func.func @transform_3(%arg0: i32, %arg1: i32) -> (i32, i32) {
    %c0_i32 = arith.constant 0 : i32
    %c0_i32_0 = arith.constant 0 : i32
    return %arg0, %c0_i32 : i32, i32
  }
}

</mosaic_0001>

<llo_original>
// kernel: tpu_custom_call.1
$region0: #{tpu_custom_call.1}
  #allocation0 [shape = 'u32[]', space=smem, size = 0x4, offset = 0x4, fixed_abs, tag = 'smem constant byte address 0x4 - core index']
  #allocation1 [shape = 'u32[144,128]{1,0:T(1,128)}', space=vmem, size = 0x12000, scoped, tag = 'internal scratch']
  #allocation2 [shape = 'f32[2,1]{1,0:T(2,128)}', space=vmem, size = 0x400, scoped, tag = 'scratch operand']
  #allocation3 [shape = 'f32[2,1]{1,0:T(2,128)}', space=vmem, size = 0x400, scoped, tag = 'scratch operand']
  #allocation4 [shape = 'f32[2,32]{1,0:T(2,128)}', space=vmem, size = 0x400, scoped, tag = 'scratch operand']
  %s0 = inlined_call_operand.hbm [shape: f32[2,8,32], index: 0, kind: input, shape index: {}]
  %s1 = inlined_call_operand.hbm [shape: f32[2,8], index: 1, kind: input, shape index: {}]
  %s2 = inlined_call_operand.vmem [shape: f32[1,32], index: 2, kind: input, shape index: {}]
  %s3 = inlined_call_operand.hbm [shape: f32[2,32], index: 3, kind: output, shape index: {}]
  %s4 = sld [smem:[#allocation0]]
  $region38: #{tpu_custom_call.1} parent=0
    _
  %s6 = ssub.s32 1, %s4
  %s7 = scalar_select 0, %s6, %s4
  $region1: #{tpu_custom_call.1} parent=0
    #allocation5 [shape = 'u8[8192]{0}', space=vmem, size = 0x2000, scoped, tag = 'input window, operand 0, single buffered']
    #allocation6 [shape = 's32[1]{0}', space=sflag, size = 0x4, scoped, tag = 'scoped memory for tpu_custom_call.1']
    #allocation7 [shape = 's32[1]{0}', space=sflag, size = 0x4, scoped, tag = 'scoped memory for tpu_custom_call.1']
    #allocation8 [shape = 'u8[1024]{0}', space=vmem, size = 0x400, scoped, tag = 'input window, operand 1, single buffered']
    #allocation9 [shape = 's32[1]{0}', space=sflag, size = 0x4, scoped, tag = 'scoped memory for tpu_custom_call.1']
    #allocation10 [shape = 'u8[1024]{0}', space=vmem, size = 0x400, scoped, tag = 'output window, operand 0, single buffered']
    %8 = vsyncpa [#allocation6], 0
    %9 = vsyncpa [#allocation9], 0
    %10 = vsyncpa [#allocation7], 0
    // Predicated region
    $region2: #{tpu_custom_call.1} parent=1 // pred_check
      _
    $region3: #{tpu_custom_call.1} parent=1 // pred_check_branch
      %12 = sbr.rel (0) target = $region5
    $region4: #{tpu_custom_call.1} parent=1 // pred_region
      %s14 = ssub.s32 256, 256
      %15 = vsyncadd [#allocation6], %s14
      %s16 = sshll.u32 [#allocation5], 4
      %s17 = int_to_ptr.vmem [resolvable:$true] %s16
      %22 = dma.hbm_to_vmem [thread:$0]  %s0, 256, %s17, [#allocation6], 128, 128, 8
    $region5: #{tpu_custom_call.1} parent=1 // pred_fallthru
      _
    // Predicated region
    $region6: #{tpu_custom_call.1} parent=1 // pred_check
      _
    $region7: #{tpu_custom_call.1} parent=1 // pred_check_branch
      %24 = sbr.rel (0) target = $region9
    $region8: #{tpu_custom_call.1} parent=1 // pred_region
      %s26 = ssub.s32 32, 32
      %27 = vsyncadd [#allocation9], %s26
      %s29 = sshll.u32 [#allocation8], 4
      %s30 = int_to_ptr.vmem [resolvable:$true] %s29
      %32 = dma.hbm_to_vmem [thread:$0]  %s1, 32, %s30, [#allocation9]
    $region9: #{tpu_custom_call.1} parent=1 // pred_fallthru
      _
    // Predicated region
    $region10: #{tpu_custom_call.1} parent=1 // pred_check
      _
    $region11: #{tpu_custom_call.1} parent=1 // pred_check_branch
      %34 = sbr.rel (0) target = $region13
    $region12: #{tpu_custom_call.1} parent=1 // pred_region
      _
    $region13: #{tpu_custom_call.1} parent=1 // pred_fallthru
      _
    // Predicated region
    $region14: #{tpu_custom_call.1} parent=1 // pred_check
      _
    $region15: #{tpu_custom_call.1} parent=1 // pred_check_branch
      %36 = sbr.rel (0) target = $region17
    $region16: #{tpu_custom_call.1} parent=1 // pred_region
      %37 = dma.done [#allocation6], 256
    $region17: #{tpu_custom_call.1} parent=1 // pred_fallthru
      _
    // Predicated region
    $region18: #{tpu_custom_call.1} parent=1 // pred_check
      _
    $region19: #{tpu_custom_call.1} parent=1 // pred_check_branch
      %39 = sbr.rel (0) target = $region21
    $region20: #{tpu_custom_call.1} parent=1 // pred_region
      %40 = dma.done [#allocation9], 32
    $region21: #{tpu_custom_call.1} parent=1 // pred_fallthru
      _
    %p41 = scmp.eq.s32.totalorder 0, 0
    // Predicated region
    $region22: #{tpu_custom_call.1} parent=1 // pred_check
      %p42 = pneg %p41
    $region23: #{tpu_custom_call.1} parent=1 // pred_check_branch
      %44 = sbr.rel (%p42) target = $region25
    $region24: #{tpu_custom_call.1} parent=1 // pred_region
      %vm45 = vcmask 1024
      %46 = vst.msk [vmem:[#allocation2] sm:$0x3] %vm45, -inf
      %47 = vst.msk [vmem:[#allocation3] sm:$0x3] %vm45, 0.0
      %vm48 = vcmask 254976
      %49 = vst.msk [vmem:[#allocation4] sm:$0x3] %vm48, 0.0
    $region25: #{tpu_custom_call.1} parent=1 // pred_fallthru
      _
    %v50 = vld [vmem:[#allocation5] sm:$0xff]
    %v51 = vld [vmem:[#allocation5 + $0x8] sm:$0xff]
    %v52 = vld [vmem:[#allocation8] sm:$0x3]
    %v53 = vld [vmem:[%s2] sm:$0x1]
    %v55 = vlaneseq
    %v56 = vshrl.u32 %v55, 7
    %v57 = vsub.s32 0, %v56
    %v58 = vrot.slane %v53, %v57
    %v60 = vmul.f32 %v50, %v58
    %vm61 = vcmask 261120
    %v62 = vsel %vm61, %v60, 0.0
    %63 = vadd.xlane.f32.xlu0 %v62
    %v64 = vpop.xlane.xlu0 %63
    %v65 = vmul.f32 %v51, %v58
    %v66 = vsel %vm61, %v65, 0.0
    %67 = vadd.xlane.f32.xlu0 %v66
    %v68 = vpop.xlane.xlu0 %67
    %v69 = vld [vmem:[#allocation2] sm:$0x3]
    %72 = vset.pattern.permute.xlu0 0
    %73 = vperm.xlu0 %72, %v64
    %v74 = vpop.permute.xlu0 %73
    %75 = vset.pattern.permute.xlu0 0
    %76 = vperm.xlu0 %75, %v68
    %v77 = vpop.permute.xlu0 %76
    %v78 = vlaneseq
    %v79 = vand.u32 %v78, 127
    %v80 = vlaneseq
    %v81 = vshrl.u32 %v80, 7
    %v82 = vsub.s32 %v79, %v81
    %v83 = vrot.slane %v74, %v82
    %v84 = vlaneseq
    %v85 = vshrl.u32 %v84, 7
    %v86 = vsub.s32 %v79, %v85
    %v87 = vrot.slane %v77, %v86
    %vm88 = vcmask 1041409
    %v89 = vsel %vm88, %v87, %v83
    %vm91 = vcmask 58368
    %v92 = vsel %vm91, %v89, -inf
    %93 = vmax.xlane.f32.xlu0 %v92
    %v94 = vpop.xlane.xlu0 %93
    %v95 = vmax.f32 %v69, %v94
    %v96 = vsub.f32 %v69, %v95
    %v97 = vmul.f32 %v96, 1.442695
    %v98 = vpow.pop %v97
    %100 = vset.pattern.permute.xlu0 0
    %101 = vperm.xlu0 %100, %v95
    %v102 = vpop.permute.xlu0 %101
    %v103 = vlaneseq
    %v104 = vshrl.u32 %v103, 7
    %v105 = vsub.s32 0, %v104
    %v106 = vrot.slane %v102, %v105
    %v107 = vlaneseq
    %v108 = vshrl.u32 %v107, 7
    %v109 = vsub.s32 1, %v108
    %v110 = vrot.slane %v102, %v109
    %v113 = vsub.f32 %v64, %v106
    %v114 = vsub.f32 %v68, %v110
    %v115 = vmul.f32 %v113, 1.442695
    %v116 = vpow.pop %v115
    %v117 = vmul.f32 %v114, 1.442695
    %v118 = vpow.pop %v117
    %v120 = vlaneseq
    %v121 = vshrl.u32 %v120, 7
    %v122 = vsub.s32 0, %v121
    %v123 = vrot.slane %v52, %v122
    %125 = vbcast.lane.b32.xlu0 %v123, 256
    %v126 = vpop.permute.xlu0 %125
    %v127 = vlaneseq
    %v128 = vshrl.u32 %v127, 7
    %v129 = vsub.s32 1, %v128
    %v130 = vrot.slane %v52, %v129
    %132 = vbcast.lane.b32.xlu0 %v130, 256
    %v133 = vpop.permute.xlu0 %132
    %v136 = vmul.f32 %v116, %v126
    %v137 = vmul.f32 %v118, %v133
    %v138 = vld [vmem:[#allocation3] sm:$0x3]
    %v139 = vmul.f32 %v98, %v138
    %142 = vset.pattern.permute.xlu0 0
    %143 = vperm.xlu0 %142, %v136
    %v144 = vpop.permute.xlu0 %143
    %145 = vset.pattern.permute.xlu0 0
    %146 = vperm.xlu0 %145, %v137
    %v147 = vpop.permute.xlu0 %146
    %v148 = vlaneseq
    %v149 = vshrl.u32 %v148, 7
    %v150 = vsub.s32 %v79, %v149
    %v151 = vrot.slane %v144, %v150
    %v152 = vlaneseq
    %v153 = vshrl.u32 %v152, 7
    %v154 = vsub.s32 %v79, %v153
    %v155 = vrot.slane %v147, %v154
    %v156 = vsel %vm88, %v155, %v151
    %v158 = vsel %vm91, %v156, 0.0
    %159 = vadd.xlane.f32.xlu0 %v158
    %v160 = vpop.xlane.xlu0 %159
    %v161 = vadd.f32 %v139, %v160
    %vm162 = vcmask 1024
    %163 = vst.msk [vmem:[#allocation3] sm:$0x3] %vm162, %v161
    %v164 = vld [vmem:[#allocation4] sm:$0x3]
    %166 = vset.pattern.permute.xlu0 0
    %167 = vperm.xlu0 %166, %v98
    %v168 = vpop.permute.xlu0 %167
    %v170 = vmul.f32 %v168, %v164
    %vm171 = vcmask 64512
    %v172 = vsel %vm171, %v151, 0
    %174 = vmatprep.subr.mxu0 0.0
    %175 = vmatpush1.msra.mxu0 0.0
    %176 = vmatprep.subr.mxu0 0.0
    %177 = vmatpush1.msra.mxu0 0.0
    %178 = vmatprep.subr.mxu0 0.0
    %179 = vmatpush1.msra.mxu0 0.0
    %180 = vmatprep.subr.mxu0 0.0
    %181 = vmatpush1.msra.mxu0 0.0
    %182 = vmatprep.subr.mxu0 0.0
    %183 = vmatpush1.msra.mxu0 0.0
    %184 = vmatprep.subr.mxu0 0.0
    %185 = vmatpush1.msra.mxu0 0.0
    %186 = vmatprep.subr.mxu0 0.0
    %187 = vmatpush1.msra.mxu0 0.0
    %188 = vmatprep.subr.mxu0 0.0
    %189 = vmatpush1.msra.mxu0 0.0
    %190 = vmatprep.subr.mxu0 0.0
    %191 = vmatpush1.msra.mxu0 0.0
    %192 = vmatprep.subr.mxu0 0.0
    %193 = vmatpush1.msra.mxu0 0.0
    %194 = vmatprep.subr.mxu0 0.0
    %195 = vmatpush1.msra.mxu0 0.0
    %196 = vmatprep.subr.mxu0 0.0
    %197 = vmatpush1.msra.mxu0 0.0
    %198 = vmatprep.subr.mxu0 0.0
    %199 = vmatpush1.msra.mxu0 0.0
    %200 = vmatprep.subr.mxu0 0.0
    %201 = vmatpush1.msra.mxu0 0.0
    %202 = vmatprep.subr.mxu0 0.0
    %203 = vmatpush1.msra.mxu0 0.0
    %204 = vmatprep.subr.mxu0 0.0
    %205 = vmatpush1.msra.mxu0 %v50
    %206 = vmatprep.subr.mxu0 0.0
    %207 = vmatpush2.msra.mxu0 0.0
    %208 = vmatprep.subr.mxu0 0.0
    %209 = vmatpush2.msra.mxu0 0.0
    %210 = vmatprep.subr.mxu0 0.0
    %211 = vmatpush2.msra.mxu0 0.0
    %212 = vmatprep.subr.mxu0 0.0
    %213 = vmatpush2.msra.mxu0 0.0
    %214 = vmatprep.subr.mxu0 0.0
    %215 = vmatpush2.msra.mxu0 0.0
    %216 = vmatprep.subr.mxu0 0.0
    %217 = vmatpush2.msra.mxu0 0.0
    %218 = vmatprep.subr.mxu0 0.0
    %219 = vmatpush2.msra.mxu0 0.0
    %220 = vmatprep.subr.mxu0 0.0
    %221 = vmatpush2.msra.mxu0 0.0
    %222 = vmatprep.subr.mxu0 0.0
    %223 = vmatpush2.msra.mxu0 0.0
    %224 = vmatprep.subr.mxu0 0.0
    %225 = vmatpush2.msra.mxu0 0.0
    %226 = vmatprep.subr.mxu0 0.0
    %227 = vmatpush2.msra.mxu0 0.0
    %228 = vmatprep.subr.mxu0 0.0
    %229 = vmatpush2.msra.mxu0 0.0
    %230 = vmatprep.subr.mxu0 0.0
    %231 = vmatpush2.msra.mxu0 0.0
    %232 = vmatprep.subr.mxu0 0.0
    %233 = vmatpush2.msra.mxu0 0.0
    %234 = vmatprep.subr.mxu0 0.0
    %235 = vmatpush2.msra.mxu0 0.0
    %236 = vmatprep.subr.mxu0 0.0
    %237 = vmatpush2.msra.mxu0 0.0
    %238 = vmatprep.mubr.f32.mxu0 0.0
    %239 = vmatmul.mubr.f32.gmra.mxu0 %v172
    %v240 = vpop.f32.mrf.mxu0
    %v241 = vadd.f32 0.0, %v240
    %v242 = vpop.f32.mrf.mxu0
    %243 = vdwg.mxu0
    %v244 = vsel %vm171, %v155, 0
    %246 = vmatprep.subr.mxu0 0.0
    %247 = vmatpush1.msra.mxu0 0.0
    %248 = vmatprep.subr.mxu0 0.0
    %249 = vmatpush1.msra.mxu0 0.0
    %250 = vmatprep.subr.mxu0 0.0
    %251 = vmatpush1.msra.mxu0 0.0
    %252 = vmatprep.subr.mxu0 0.0
    %253 = vmatpush1.msra.mxu0 0.0
    %254 = vmatprep.subr.mxu0 0.0
    %255 = vmatpush1.msra.mxu0 0.0
    %256 = vmatprep.subr.mxu0 0.0
    %257 = vmatpush1.msra.mxu0 0.0
    %258 = vmatprep.subr.mxu0 0.0
    %259 = vmatpush1.msra.mxu0 0.0
    %260 = vmatprep.subr.mxu0 0.0
    %261 = vmatpush1.msra.mxu0 0.0
    %262 = vmatprep.subr.mxu0 0.0
    %263 = vmatpush1.msra.mxu0 0.0
    %264 = vmatprep.subr.mxu0 0.0
    %265 = vmatpush1.msra.mxu0 0.0
    %266 = vmatprep.subr.mxu0 0.0
    %267 = vmatpush1.msra.mxu0 0.0
    %268 = vmatprep.subr.mxu0 0.0
    %269 = vmatpush1.msra.mxu0 0.0
    %270 = vmatprep.subr.mxu0 0.0
    %271 = vmatpush1.msra.mxu0 0.0
    %272 = vmatprep.subr.mxu0 0.0
    %273 = vmatpush1.msra.mxu0 0.0
    %274 = vmatprep.subr.mxu0 0.0
    %275 = vmatpush1.msra.mxu0 0.0
    %276 = vmatprep.subr.mxu0 0.0
    %277 = vmatpush1.msra.mxu0 %v51
    %278 = vmatprep.subr.mxu0 0.0
    %279 = vmatpush2.msra.mxu0 0.0
    %280 = vmatprep.subr.mxu0 0.0
    %281 = vmatpush2.msra.mxu0 0.0
    %282 = vmatprep.subr.mxu0 0.0
    %283 = vmatpush2.msra.mxu0 0.0
    %284 = vmatprep.subr.mxu0 0.0
    %285 = vmatpush2.msra.mxu0 0.0
    %286 = vmatprep.subr.mxu0 0.0
    %287 = vmatpush2.msra.mxu0 0.0
    %288 = vmatprep.subr.mxu0 0.0
    %289 = vmatpush2.msra.mxu0 0.0
    %290 = vmatprep.subr.mxu0 0.0
    %291 = vmatpush2.msra.mxu0 0.0
    %292 = vmatprep.subr.mxu0 0.0
    %293 = vmatpush2.msra.mxu0 0.0
    %294 = vmatprep.subr.mxu0 0.0
    %295 = vmatpush2.msra.mxu0 0.0
    %296 = vmatprep.subr.mxu0 0.0
    %297 = vmatpush2.msra.mxu0 0.0
    %298 = vmatprep.subr.mxu0 0.0
    %299 = vmatpush2.msra.mxu0 0.0
    %300 = vmatprep.subr.mxu0 0.0
    %301 = vmatpush2.msra.mxu0 0.0
    %302 = vmatprep.subr.mxu0 0.0
    %303 = vmatpush2.msra.mxu0 0.0
    %304 = vmatprep.subr.mxu0 0.0
    %305 = vmatpush2.msra.mxu0 0.0
    %306 = vmatprep.subr.mxu0 0.0
    %307 = vmatpush2.msra.mxu0 0.0
    %308 = vmatprep.subr.mxu0 0.0
    %309 = vmatpush2.msra.mxu0 0.0
    %310 = vmatprep.mubr.f32.mxu0 0.0
    %311 = vmatmul.mubr.f32.gmra.mxu0 %v244
    %v312 = vpop.f32.mrf.mxu0
    %v313 = vadd.f32 0.0, %v312
    %v314 = vpop.f32.mrf.mxu0
    %315 = vdwg.mxu0
    %v318 = vrot.slane %v313, 7
    %v319 = vsel %vm88, %v318, %v241
    %v321 = vadd.f32 %v170, %v319
    %vm322 = vcmask 254976
    %323 = vst.msk [vmem:[#allocation4] sm:$0x3] %vm322, %v321
    %324 = vst.msk [vmem:[#allocation2] sm:$0x3] %vm162, %v95
    // Predicated region
    $region26: #{tpu_custom_call.1} parent=1 // pred_check
      %p325 = pneg %p41
    $region27: #{tpu_custom_call.1} parent=1 // pred_check_branch
      %327 = sbr.rel (%p325) target = $region29
    $region28: #{tpu_custom_call.1} parent=1 // pred_region
      %v328 = vld [vmem:[#allocation3] sm:$0x3]
      %v329 = vrcp.pop %v328
      %v330 = vld [vmem:[#allocation4] sm:$0x3]
      %332 = vset.pattern.permute.xlu0 0
      %333 = vperm.xlu0 %332, %v329
      %v334 = vpop.permute.xlu0 %333
      %v336 = vmul.f32 %v330, %v334
      %337 = vst.msk [vmem:[#allocation10] sm:$0x3] %vm322, %v336
    $region29: #{tpu_custom_call.1} parent=1 // pred_fallthru
      _
    // Predicated region
    $region30: #{tpu_custom_call.1} parent=1 // pred_check
      _
    $region31: #{tpu_custom_call.1} parent=1 // pred_check_branch
      %339 = sbr.rel (0) target = $region33
    $region32: #{tpu_custom_call.1} parent=1 // pred_region
      %s341 = ssub.s32 32, 32
      %342 = vsyncadd [#allocation7], %s341
      %s344 = sshll.u32 [#allocation10], 4
      %s345 = int_to_ptr.vmem [resolvable:$true] %s344
      %347 = dma.vmem_to_hbm [thread:$0]  %s345, 32, %s3, [#allocation7]
    $region33: #{tpu_custom_call.1} parent=1 // pred_fallthru
      _
    // Predicated region
    $region34: #{tpu_custom_call.1} parent=1 // pred_check
      _
    $region35: #{tpu_custom_call.1} parent=1 // pred_check_branch
      %349 = sbr.rel (0) target = $region37
    $region36: #{tpu_custom_call.1} parent=1 // pred_region
      %350 = dma.done [#allocation7], 32
    $region37: #{tpu_custom_call.1} parent=1 // pred_fallthru
      _
    %351 = vsyncpa [#allocation6], 1
    %352 = vsyncpa [#allocation9], 1
    %353 = vsyncpa [#allocation7], 1

</llo_original>
